<compile_context>
chip_gen: v7x
topology: tpu7x:2x2x1
jax: 0.10.0
libtpu: 0.0.40
codegen_flags: <defaults>
</compile_context>

<pallas_src>
import jax
import jax.numpy as jnp
from jax.experimental import pallas as pl
from jax.experimental.pallas import tpu as pltpu

_LANE_CANDIDATES = (8192, 4096, 2048, 1024, 512, 256, 128)
_TARGET_BLOCK_BYTES = 4 * 1024 * 1024    # per block buffer (in or out)
_VMEM_LIMIT_BYTES = 48 * 1024 * 1024     # explicit: > v5e's 16 MiB default, < v7x's 64 MiB
_SUBLANE_GRANULE = 32                    # multiple-of-32 rows covers f32/bf16/int8 packing
_MIN_GRID_STEPS = 4                      # >= 2 steps per TensorCore on v7x


def _h_sigmoid_kernel(x_ref, o_ref):
    x = x_ref[...]
    # ReLU6(x + 3) / 6  ==  clip(x * (1/6) + 0.5, 0, 1)
    # Python-float constants are weakly typed, so bf16 inputs stay bf16 (no f32 upcast).
    o_ref[...] = jnp.clip(x * (1.0 / 6.0) + 0.5, 0.0, 1.0).astype(o_ref.dtype)


def _h_sigmoid_jnp(x):
    return jnp.clip(x * (1.0 / 6.0) + 0.5, 0.0, 1.0).astype(x.dtype)


def _h_sigmoid_flat(flat: jax.Array) -> jax.Array:
    """Pallas kernel on a flat array whose size is a (nonzero) multiple of 128."""
    n = flat.size
    dtype = flat.dtype
    itemsize = jnp.dtype(dtype).itemsize

    # Widest lane-dense width that divides n exactly (no pad copy on this path).
    lane_width = 128
    for w in _LANE_CANDIDATES:
        if n % w == 0:
            lane_width = w
            break

    rows = n // lane_width
    x2d = flat.reshape(rows, lane_width)      # free reshape of a contiguous array

    # Size blocks by BYTES so all dtypes sit on the same point of the HBM-roofline curve.
    target_rows = max(1, (_TARGET_BLOCK_BYTES // itemsize) // lane_width)

    if rows <= _SUBLANE_GRANULE:
        # Small input: single block covering the full extent (exempt from the (8,128)
        # divisibility rule because the block equals the full array dims).
        block_rows = rows
        grid = (1,)
    else:
        # Cap the block so the grid has >= _MIN_GRID_STEPS steps when possible:
        # keeps both v7x TensorCores busy and double-buffering engaged.
        cap = max(
            _SUBLANE_GRANULE,
            (pl.cdiv(rows, _MIN_GRID_STEPS) // _SUBLANE_GRANULE) * _SUBLANE_GRANULE,
        )
        block_rows = min(target_rows, cap)
        block_rows = max(
            _SUBLANE_GRANULE, (block_rows // _SUBLANE_GRANULE) * _SUBLANE_GRANULE
        )
        grid = (pl.cdiv(rows, block_rows),)   # partial last block handled by Pallas

    out2d = pl.pallas_call(
        _h_sigmoid_kernel,
        out_shape=jax.ShapeDtypeStruct((rows, lane_width), dtype),
        grid=grid,
        in_specs=[pl.BlockSpec((block_rows, lane_width), lambda i: (i, 0))],
        out_specs=pl.BlockSpec((block_rows, lane_width), lambda i: (i, 0)),
        compiler_params=pltpu.CompilerParams(
            dimension_semantics=("parallel",),
            vmem_limit_bytes=_VMEM_LIMIT_BYTES,
        ),
    )(x2d)
    return out2d.reshape(-1)


def h_sigmoid(x: jax.Array) -> jax.Array:
    """Elementwise hard-sigmoid matching the torch h_sigmoid forward (any shape)."""
    orig_shape = x.shape
    dtype = x.dtype
    n = x.size

    if n == 0:
        return jnp.zeros(orig_shape, dtype=dtype)

    flat = jnp.ravel(x)                       # free for contiguous inputs
    rem = n % 128

    if n < 128:
        # Tiny input: not worth a kernel launch.
        return _h_sigmoid_jnp(flat).reshape(orig_shape)

    if rem == 0:
        # Common path: zero extra HBM traffic.
        return _h_sigmoid_flat(flat).reshape(orig_shape)

    # Ragged fallback: kernel on the 128-divisible bulk, plain jnp on the <128-element
    # tail.  Avoids the old pad + output-slice double HBM round-trip.
    bulk_out = _h_sigmoid_flat(flat[: n - rem])
    tail_out = _h_sigmoid_jnp(flat[n - rem:])
    return jnp.concatenate([bulk_out, tail_out]).reshape(orig_shape)


if __name__ == "__main__":
    key = jax.random.PRNGKey(0)

    # Small NCHW input consistent with how h_sigmoid is used (activation map).
    x = jax.random.normal(key, (2, 4, 16, 16), dtype=jnp.float32) * 4.0
    y = jax.block_until_ready(h_sigmoid(x))
    y_ref = jnp.clip(x + 3.0, 0.0, 6.0) / 6.0
    assert y.shape == x.shape and y.dtype == x.dtype
    assert jnp.allclose(y, y_ref, atol=1e-6), "mismatch vs reference (main path)"

    # Ragged shape exercising the bulk + tail fallback path (420 = 3*128 + 36).
    x2 = jax.random.normal(jax.random.PRNGKey(1), (2, 3, 70), dtype=jnp.float32) * 4.0
    y2 = jax.block_until_ready(h_sigmoid(x2))
    y2_ref = jnp.clip(x2 + 3.0, 0.0, 6.0) / 6.0
    assert y2.shape == x2.shape and y2.dtype == x2.dtype
    assert jnp.allclose(y2, y2_ref, atol=1e-6), "mismatch vs reference (ragged path)"

    print("KERNEL_OK")
</pallas_src>

<mosaic_0001>
module attributes {stable_mosaic.version = 11 : i64} {
  func.func @_h_sigmoid_kernel(%arg0: i32, %arg1: memref<1x2048xf32, #tpu.memory_space<vmem>>, %arg2: memref<1x2048xf32, #tpu.memory_space<vmem>>) attributes {dimension_semantics = [#tpu.dimension_semantics<parallel>], iteration_bounds = array<i64: 1>, scalar_prefetch = 0 : i64, scratch_operands = 0 : i64, tpu.core_type = #tpu.core_type<tc>, window_params = [{transform_indices = @transform_0, window_bounds = array<i64: 1, 2048>}, {transform_indices = @transform_1, window_bounds = array<i64: 1, 2048>}]} {
    %c0 = arith.constant 0 : index
    %c0_0 = arith.constant 0 : index
    %0 = vector.load %arg1[%c0, %c0_0] : memref<1x2048xf32, #tpu.memory_space<vmem>>, vector<1x2048xf32>
    %cst = arith.constant 0.166666672 : f32
    %1 = vector.broadcast %cst : f32 to vector<1x2048xf32>
    %2 = arith.mulf %0, %1 : vector<1x2048xf32>
    %cst_1 = arith.constant 5.000000e-01 : f32
    %3 = vector.broadcast %cst_1 : f32 to vector<1x2048xf32>
    %4 = arith.addf %2, %3 : vector<1x2048xf32>
    %cst_2 = arith.constant 0.000000e+00 : f32
    %cst_3 = arith.constant 1.000000e+00 : f32
    %5 = vector.broadcast %cst_2 : f32 to vector<1x2048xf32>
    %6 = arith.maximumf %5, %4 : vector<1x2048xf32>
    %7 = vector.broadcast %cst_3 : f32 to vector<1x2048xf32>
    %8 = arith.minimumf %7, %6 : vector<1x2048xf32>
    %c0_4 = arith.constant 0 : index
    %c0_5 = arith.constant 0 : index
    %9 = vector.load %arg2[%c0_4, %c0_5] : memref<1x2048xf32, #tpu.memory_space<vmem>>, vector<1x2048xf32>
    tpu.vector_store %arg2[%c0_4, %c0_5], %8 {strides = array<i32>} : memref<1x2048xf32, #tpu.memory_space<vmem>>, vector<1x2048xf32>,
    return
  }
  func.func @transform_0(%arg0: i32) -> (i32, i32) {
    %c0_i32 = arith.constant 0 : i32
    %c0_i32_0 = arith.constant 0 : i32
    return %arg0, %c0_i32 : i32, i32
  }
  func.func @transform_1(%arg0: i32) -> (i32, i32) {
    %c0_i32 = arith.constant 0 : i32
    %c0_i32_0 = arith.constant 0 : i32
    return %arg0, %c0_i32 : i32, i32
  }
}

</mosaic_0001>

<llo_original>
// kernel: tpu_custom_call.1
$region0: #{tpu_custom_call.1}
  #allocation0 [shape = 'u32[]', space=smem, size = 0x4, offset = 0x4, fixed_abs, tag = 'smem constant byte address 0x4 - core index']
  #allocation1 [shape = 'u32[144,128]{1,0:T(1,128)}', space=vmem, size = 0x12000, scoped, tag = 'internal scratch']
  %s0 = inlined_call_operand.hbm [shape: f32[1,2048], index: 0, kind: input, shape index: {}]
  %s1 = inlined_call_operand.hbm [shape: f32[1,2048], index: 1, kind: output, shape index: {}]
  %s2 = sld [smem:[#allocation0]]
  $region18: #{tpu_custom_call.1} parent=0
    _
  %s4 = ssub.s32 1, %s2
  %s5 = scalar_select 0, %s4, %s2
  $region1: #{tpu_custom_call.1} parent=0
    #allocation2 [shape = 'u8[8192]{0}', space=vmem, size = 0x2000, scoped, tag = 'input window, operand 0, single buffered']
    #allocation3 [shape = 's32[1]{0}', space=sflag, size = 0x4, scoped, tag = 'scoped memory for tpu_custom_call.1']
    #allocation4 [shape = 's32[1]{0}', space=sflag, size = 0x4, scoped, tag = 'scoped memory for tpu_custom_call.1']
    #allocation5 [shape = 'u8[8192]{0}', space=vmem, size = 0x2000, scoped, tag = 'output window, operand 0, single buffered']
    %6 = vsyncpa [#allocation3], 0
    %7 = vsyncpa [#allocation4], 0
    // Predicated region
    $region2: #{tpu_custom_call.1} parent=1 // pred_check
      _
    $region3: #{tpu_custom_call.1} parent=1 // pred_check_branch
      %9 = sbr.rel (0) target = $region5
    $region4: #{tpu_custom_call.1} parent=1 // pred_region
      %s11 = ssub.s32 256, 256
      %12 = vsyncadd [#allocation3], %s11
      %s14 = sshll.u32 [#allocation2], 4
      %s15 = int_to_ptr.vmem [resolvable:$true] %s14
      %17 = dma.hbm_to_vmem [thread:$0]  %s0, 256, %s15, [#allocation3]
    $region5: #{tpu_custom_call.1} parent=1 // pred_fallthru
      _
    // Predicated region
    $region6: #{tpu_custom_call.1} parent=1 // pred_check
      _
    $region7: #{tpu_custom_call.1} parent=1 // pred_check_branch
      %19 = sbr.rel (0) target = $region9
    $region8: #{tpu_custom_call.1} parent=1 // pred_region
      %20 = dma.done [#allocation3], 256
    $region9: #{tpu_custom_call.1} parent=1 // pred_fallthru
      _
    %v21 = vld [vmem:[#allocation2] sm:$0xff]
    %v22 = vld [vmem:[#allocation2 + $0x8] sm:$0xff]
    %v23 = vmul.f32 %v21, 0.16666667
    %v24 = vmul.f32 %v22, 0.16666667
    %v25 = vadd.f32 %v23, 0.5
    %v26 = vadd.f32 %v24, 0.5
    %v27 = vmax.f32 %v25, 0.0
    %v28 = vmax.f32 %v26, 0.0
    %v29 = vmin.f32 %v27, 1.0
    %v30 = vmin.f32 %v28, 1.0
    %31 = vst [vmem:[#allocation5] sm:$0xff] %v29
    %32 = vst [vmem:[#allocation5 + $0x8] sm:$0xff] %v30
    // Predicated region
    $region10: #{tpu_custom_call.1} parent=1 // pred_check
      _
    $region11: #{tpu_custom_call.1} parent=1 // pred_check_branch
      %34 = sbr.rel (0) target = $region13
    $region12: #{tpu_custom_call.1} parent=1 // pred_region
      %s36 = ssub.s32 256, 256
      %37 = vsyncadd [#allocation4], %s36
      %s39 = sshll.u32 [#allocation5], 4
      %s40 = int_to_ptr.vmem [resolvable:$true] %s39
      %42 = dma.vmem_to_hbm [thread:$0]  %s40, 256, %s1, [#allocation4]
    $region13: #{tpu_custom_call.1} parent=1 // pred_fallthru
      _
    // Predicated region
    $region14: #{tpu_custom_call.1} parent=1 // pred_check
      _
    $region15: #{tpu_custom_call.1} parent=1 // pred_check_branch
      %44 = sbr.rel (0) target = $region17
    $region16: #{tpu_custom_call.1} parent=1 // pred_region
      %45 = dma.done [#allocation4], 256
    $region17: #{tpu_custom_call.1} parent=1 // pred_fallthru
      _
    %46 = vsyncpa [#allocation3], 1
    %47 = vsyncpa [#allocation4], 1

</llo_original>
